<compile_context>
chip_gen: v7x
topology: tpu7x:2x2x1
jax: 0.10.0
libtpu: 0.0.40
codegen_flags: <defaults>
</compile_context>

<pallas_src>
import jax
import jax.numpy as jnp
from jax.experimental import pallas as pl
from jax.experimental.pallas import tpu as pltpu


_VPU_CHANNEL_LIMIT = 32  # use the unrolled VPU path when both channel counts are <= this


# ----------------------------------------------------------------------------
# Hardware / tiling heuristics
# ----------------------------------------------------------------------------
def _tpu_caps():
    """(physical VMEM bytes, TensorCores per chip). Defensive trace-time query."""
    vmem_phys = 64 * 1024 * 1024   # conservative default if detection fails
    num_cores = 1
    try:
        info = pltpu.get_tpu_info()
        vmem_phys = int(getattr(info, "vmem_capacity_bytes", vmem_phys))
    except Exception:
        pass
    try:
        kind = jax.devices()[0].device_kind.lower()
        if "v7" in kind:  # v7x: 2 TCs per chip, 64 MiB VMEM per TC
            num_cores = 2
            vmem_phys = min(vmem_phys, 64 * 1024 * 1024)
    except Exception:
        pass
    return vmem_phys, num_cores


def _largest_tile_p(num_pixels, max_pixels):
    """Largest lane-dense pixel tile <= max_pixels.

    Prefers a multiple of 128 that divides num_pixels evenly (no sliver tail
    tile); falls back to the largest multiple of 128 under the cap.
    """
    if num_pixels <= max_pixels:
        return num_pixels                     # full pixel axis (always legal)
    cap_k = max(max_pixels // 128, 1)
    for k in range(cap_k, 0, -1):
        if num_pixels % (k * 128) == 0:
            return k * 128
    return cap_k * 128


def _choose_tiles(N, C_in, C_out, P, itemsize, scoped_vmem, num_cores,
                  allow_batch_widening):
    """Pick (nb, tile_p): bytes per grid step ~ nb*(C_in+C_out)*tile_p*itemsize."""
    per_pixel_bytes = (C_in + C_out) * itemsize
    # 1/4 of scoped VMEM for one in+out set: x2 for double-buffering plus ~1x
    # headroom for in-kernel f32 temporaries.
    max_step_pixels = max(scoped_vmem // 4 // per_pixel_bytes, 128)

    tile_p = _largest_tile_p(P, max_step_pixels)

    # Widen along the batch axis when a full image's pixels are small relative
    # to the byte budget: largest divisor of N with nb * tile_p <= budget.
    nb = 1
    if allow_batch_widening and tile_p == P:
        cap_nb = max(max_step_pixels // max(P, 1), 1)
        for d in range(min(N, cap_nb), 0, -1):
            if N % d == 0:
                nb = d
                break

    # v7x: make sure both TensorCores get at least one grid step.
    if num_cores >= 2:
        for _ in range(8):
            steps = pl.cdiv(N, nb) * pl.cdiv(P, tile_p)
            if steps >= 2:
                break
            if nb > 1:
                nb = max(1, nb // 2)
            elif tile_p == P and P > 128:
                tile_p = max(128, ((P // 2) // 128) * 128)
            else:
                break  # single tiny call; nothing sensible to split
    return nb, tile_p


# ----------------------------------------------------------------------------
# Kernel bodies
# ----------------------------------------------------------------------------
def _make_vpu_kernel(c_in, c_out):
    """Unrolled VPU broadcast-FMA over C_in (no >90%-padded MXU push/pop)."""

    def kernel(w_ref, b_ref, x_ref, o_ref):
        # w_ref: (C_out, C_in)   b_ref: (C_out, 1)
        # x_ref: (nb, C_in, TP)  o_ref: (nb, C_out, TP)
        x = x_ref[...]
        w = w_ref[...].astype(jnp.float32)
        b = b_ref[...].astype(jnp.float32)
        acc = None
        for ci in range(c_in):
            xc = x[:, ci:ci + 1, :].astype(jnp.float32)        # (nb, 1, TP)
            wc = w[:, ci:ci + 1].reshape(1, c_out, 1)          # (1, C_out, 1)
            term = wc * xc                                      # (nb, C_out, TP)
            acc = term if acc is None else acc + term
        acc = acc + b.reshape(1, c_out, 1)
        o_ref[...] = acc.astype(o_ref.dtype)

    return kernel


def _mxu_kernel(w_ref, b_ref, x_ref, o_ref):
    # w_ref: (C_out, C_in)  b_ref: (C_out, 1)  x_ref: (C_in, TP)  o_ref: (C_out, TP)
    acc = jnp.dot(w_ref[...], x_ref[...], preferred_element_type=jnp.float32)
    o_ref[...] = (acc + b_ref[...]).astype(o_ref.dtype)


# ----------------------------------------------------------------------------
# Wrapper
# ----------------------------------------------------------------------------
def out_conv(x_nchw, weight, bias):
    """1x1 conv matching torch.nn.Conv2d(in_ch, out_ch, kernel_size=1).

    Args:
      x_nchw: (N, C_in, H, W) input.
      weight: (C_out, C_in, 1, 1) conv weight (PyTorch layout).
      bias:   (C_out,) conv bias.
    Returns:
      (N, C_out, H, W) output.
    """
    N, C_in, H, W = x_nchw.shape
    C_out = weight.shape[0]
    P = H * W
    itemsize = jnp.dtype(x_nchw.dtype).itemsize

    vmem_phys, num_cores = _tpu_caps()
    scoped_vmem = int(vmem_phys * 3 // 4)   # ~96 MiB on v5e/v6e, ~48 MiB on v7x

    use_vpu = (C_in <= _VPU_CHANNEL_LIMIT) and (C_out <= _VPU_CHANNEL_LIMIT)

    nb, tile_p = _choose_tiles(N, C_in, C_out, P, itemsize, scoped_vmem,
                               num_cores, allow_batch_widening=use_vpu)

    # Pure reshapes (no transposes, no extra HBM passes).
    x3 = x_nchw.reshape(N, C_in, P)          # pixels on the lane axis
    w_mat = weight.reshape(C_out, C_in)
    b_col = bias.reshape(C_out, 1)

    grid = (pl.cdiv(N, nb), pl.cdiv(P, tile_p))

    if use_vpu:
        kernel = _make_vpu_kernel(C_in, C_out)
        x_block = (nb, C_in, tile_p)
        o_block = (nb, C_out, tile_p)
    else:
        kernel = _mxu_kernel
        x_block = (None, C_in, tile_p)       # batch dim squeezed in-kernel
        o_block = (None, C_out, tile_p)

    cost = pl.CostEstimate(
        flops=2 * N * P * C_in * C_out,
        transcendentals=0,
        bytes_accessed=itemsize * (N * P * C_in + N * P * C_out
                                   + C_in * C_out + C_out),
    )

    out3 = pl.pallas_call(
        kernel,
        out_shape=jax.ShapeDtypeStruct((N, C_out, P), x_nchw.dtype),
        grid_spec=pltpu.PrefetchScalarGridSpec(
            num_scalar_prefetch=0,
            grid=grid,
            in_specs=[
                # Weight / bias: resident (constant block index across the grid).
                pl.BlockSpec((C_out, C_in), lambda n, p: (0, 0)),
                pl.BlockSpec((C_out, 1), lambda n, p: (0, 0)),
                # Input: batch block x pixel tile (lane-dense).
                pl.BlockSpec(x_block, lambda n, p: (n, 0, p)),
            ],
            out_specs=pl.BlockSpec(o_block, lambda n, p: (n, 0, p)),
        ),
        compiler_params=pltpu.CompilerParams(
            # Disjoint output tiles on both axes -> fully parallel (megacore-splittable).
            dimension_semantics=("parallel", "parallel"),
            vmem_limit_bytes=scoped_vmem,
        ),
        cost_estimate=cost,
    )(w_mat, b_col, x3)

    # Pure reshape back to NCHW.
    return out3.reshape(N, C_out, H, W)


if __name__ == "__main__":
    # Small shapes consistent with the module: batch=2, in_channels=4,
    # out_channels=3, spatial=16x16.
    N, C_in, C_out, H, W = 2, 4, 3, 16, 16

    key = jax.random.PRNGKey(0)
    kx, kw, kb = jax.random.split(key, 3)

    x = jax.random.normal(kx, (N, C_in, H, W), dtype=jnp.float32)

    # Deterministic init mimicking PyTorch Conv2d default:
    # U(-1/sqrt(fan_in), 1/sqrt(fan_in)) with fan_in = C_in * 1 * 1.
    bound = 1.0 / jnp.sqrt(jnp.float32(C_in))
    weight = jax.random.uniform(kw, (C_out, C_in, 1, 1), jnp.float32,
                                minval=-bound, maxval=bound)
    bias = jax.random.uniform(kb, (C_out,), jnp.float32,
                              minval=-bound, maxval=bound)

    y = out_conv(x, weight, bias)
    y = jax.block_until_ready(y)

    # Cross-check against a plain-JAX reference of the 1x1 conv.
    y_ref = (jnp.einsum("nchw,oc->nohw", x, weight.reshape(C_out, C_in))
             + bias[None, :, None, None])
    assert y.shape == (N, C_out, H, W)
    assert jnp.allclose(y, y_ref, atol=1e-5, rtol=1e-5)

    print("KERNEL_OK")
</pallas_src>

<mosaic_0001>
module attributes {stable_mosaic.version = 11 : i64} {
  func.func @kernel(%arg0: i32, %arg1: i32, %arg2: memref<3x4xf32, #tpu.memory_space<vmem>>, %arg3: memref<3x1xf32, #tpu.memory_space<vmem>>, %arg4: memref<2x4x256xf32, #tpu.memory_space<vmem>>, %arg5: memref<2x3x256xf32, #tpu.memory_space<vmem>>) attributes {dimension_semantics = [#tpu.dimension_semantics<parallel>, #tpu.dimension_semantics<parallel>], iteration_bounds = array<i64: 1, 1>, scalar_prefetch = 0 : i64, scratch_operands = 0 : i64, tpu.core_type = #tpu.core_type<tc>, window_params = [{pipeline_mode = #tpu.pipeline_mode<synchronous>, transform_indices = @transform_0, window_bounds = array<i64: 3, 4>}, {pipeline_mode = #tpu.pipeline_mode<synchronous>, transform_indices = @transform_1, window_bounds = array<i64: 3, 1>}, {transform_indices = @transform_2, window_bounds = array<i64: 2, 4, 256>}, {transform_indices = @transform_3, window_bounds = array<i64: 2, 3, 256>}]} {
    %c0 = arith.constant 0 : index
    %c0_0 = arith.constant 0 : index
    %c0_1 = arith.constant 0 : index
    %0 = vector.load %arg4[%c0, %c0_0, %c0_1] : memref<2x4x256xf32, #tpu.memory_space<vmem>>, vector<2x4x256xf32>
    %c0_2 = arith.constant 0 : index
    %c0_3 = arith.constant 0 : index
    %1 = vector.load %arg2[%c0_2, %c0_3] : memref<3x4xf32, #tpu.memory_space<vmem>>, vector<3x4xf32>
    %c0_4 = arith.constant 0 : index
    %c0_5 = arith.constant 0 : index
    %2 = vector.load %arg3[%c0_4, %c0_5] : memref<3x1xf32, #tpu.memory_space<vmem>>, vector<3x1xf32>
    %3 = vector.extract_strided_slice %0 {offsets = [0, 0, 0], sizes = [2, 1, 256], strides = [1, 1, 1]} : vector<2x4x256xf32> to vector<2x1x256xf32>
    %4 = vector.extract_strided_slice %1 {offsets = [0, 0], sizes = [3, 1], strides = [1, 1]} : vector<3x4xf32> to vector<3x1xf32>
    %5 = vector.shape_cast %4 : vector<3x1xf32> to vector<1x3x1xf32>
    %6 = vector.broadcast %5 : vector<1x3x1xf32> to vector<2x3x256xf32>
    %7 = vector.broadcast %3 : vector<2x1x256xf32> to vector<2x3x256xf32>
    %8 = arith.mulf %6, %7 : vector<2x3x256xf32>
    %9 = vector.extract_strided_slice %0 {offsets = [0, 1, 0], sizes = [2, 1, 256], strides = [1, 1, 1]} : vector<2x4x256xf32> to vector<2x1x256xf32>
    %10 = vector.extract_strided_slice %1 {offsets = [0, 1], sizes = [3, 1], strides = [1, 1]} : vector<3x4xf32> to vector<3x1xf32>
    %11 = vector.shape_cast %10 : vector<3x1xf32> to vector<1x3x1xf32>
    %12 = vector.broadcast %11 : vector<1x3x1xf32> to vector<2x3x256xf32>
    %13 = vector.broadcast %9 : vector<2x1x256xf32> to vector<2x3x256xf32>
    %14 = arith.mulf %12, %13 : vector<2x3x256xf32>
    %15 = arith.addf %8, %14 : vector<2x3x256xf32>
    %16 = vector.extract_strided_slice %0 {offsets = [0, 2, 0], sizes = [2, 1, 256], strides = [1, 1, 1]} : vector<2x4x256xf32> to vector<2x1x256xf32>
    %17 = vector.extract_strided_slice %1 {offsets = [0, 2], sizes = [3, 1], strides = [1, 1]} : vector<3x4xf32> to vector<3x1xf32>
    %18 = vector.shape_cast %17 : vector<3x1xf32> to vector<1x3x1xf32>
    %19 = vector.broadcast %18 : vector<1x3x1xf32> to vector<2x3x256xf32>
    %20 = vector.broadcast %16 : vector<2x1x256xf32> to vector<2x3x256xf32>
    %21 = arith.mulf %19, %20 : vector<2x3x256xf32>
    %22 = arith.addf %15, %21 : vector<2x3x256xf32>
    %23 = vector.extract_strided_slice %0 {offsets = [0, 3, 0], sizes = [2, 1, 256], strides = [1, 1, 1]} : vector<2x4x256xf32> to vector<2x1x256xf32>
    %24 = vector.extract_strided_slice %1 {offsets = [0, 3], sizes = [3, 1], strides = [1, 1]} : vector<3x4xf32> to vector<3x1xf32>
    %25 = vector.shape_cast %24 : vector<3x1xf32> to vector<1x3x1xf32>
    %26 = vector.broadcast %25 : vector<1x3x1xf32> to vector<2x3x256xf32>
    %27 = vector.broadcast %23 : vector<2x1x256xf32> to vector<2x3x256xf32>
    %28 = arith.mulf %26, %27 : vector<2x3x256xf32>
    %29 = arith.addf %22, %28 : vector<2x3x256xf32>
    %30 = vector.shape_cast %2 : vector<3x1xf32> to vector<1x3x1xf32>
    %31 = vector.broadcast %30 : vector<1x3x1xf32> to vector<2x3x256xf32>
    %32 = arith.addf %29, %31 : vector<2x3x256xf32>
    %c0_6 = arith.constant 0 : index
    %c0_7 = arith.constant 0 : index
    %c0_8 = arith.constant 0 : index
    %33 = vector.load %arg5[%c0_6, %c0_7, %c0_8] : memref<2x3x256xf32, #tpu.memory_space<vmem>>, vector<2x3x256xf32>
    tpu.vector_store %arg5[%c0_6, %c0_7, %c0_8], %32 {strides = array<i32>} : memref<2x3x256xf32, #tpu.memory_space<vmem>>, vector<2x3x256xf32>,
    return
  }
  func.func @transform_0(%arg0: i32, %arg1: i32) -> (i32, i32) {
    %c0_i32 = arith.constant 0 : i32
    %c0_i32_0 = arith.constant 0 : i32
    %c0_i32_1 = arith.constant 0 : i32
    return %c0_i32, %c0_i32_0 : i32, i32
  }
  func.func @transform_1(%arg0: i32, %arg1: i32) -> (i32, i32) {
    %c0_i32 = arith.constant 0 : i32
    %c0_i32_0 = arith.constant 0 : i32
    %c0_i32_1 = arith.constant 0 : i32
    return %c0_i32, %c0_i32_0 : i32, i32
  }
  func.func @transform_2(%arg0: i32, %arg1: i32) -> (i32, i32, i32) {
    %c0_i32 = arith.constant 0 : i32
    %c0_i32_0 = arith.constant 0 : i32
    return %arg0, %c0_i32, %arg1 : i32, i32, i32
  }
  func.func @transform_3(%arg0: i32, %arg1: i32) -> (i32, i32, i32) {
    %c0_i32 = arith.constant 0 : i32
    %c0_i32_0 = arith.constant 0 : i32
    return %arg0, %c0_i32, %arg1 : i32, i32, i32
  }
}

</mosaic_0001>

<llo_original>
// kernel: tpu_custom_call.1
$region0: #{tpu_custom_call.1}
  #allocation0 [shape = 'u32[]', space=smem, size = 0x4, offset = 0x4, fixed_abs, tag = 'smem constant byte address 0x4 - core index']
  #allocation1 [shape = 'u32[144,128]{1,0:T(1,128)}', space=vmem, size = 0x12000, scoped, tag = 'internal scratch']
  %s0 = inlined_call_operand.vmem [shape: f32[3,4], index: 0, kind: input, shape index: {}]
  %s1 = inlined_call_operand.vmem [shape: f32[3,1], index: 1, kind: input, shape index: {}]
  %s2 = inlined_call_operand.hbm [shape: f32[2,4,256], index: 2, kind: input, shape index: {}]
  %s3 = inlined_call_operand.vmem [shape: f32[2,3,256], index: 3, kind: output, shape index: {}]
  %s4 = sld [smem:[#allocation0]]
  $region26: #{tpu_custom_call.1} parent=0
    _
  %s6 = ssub.s32 1, %s4
  %s7 = scalar_select 0, %s6, %s4
  $region1: #{tpu_custom_call.1} parent=0
    #allocation2 [shape = 'u8[8192]{0}', space=vmem, size = 0x2000, scoped, tag = 'input window, operand 2, single buffered']
    #allocation3 [shape = 's32[1]{0}', space=sflag, size = 0x4, scoped, tag = 'scoped memory for tpu_custom_call.1']
    %8 = vsyncpa [#allocation3], 0
    // Predicated region
    $region2: #{tpu_custom_call.1} parent=1 // pred_check
      _
    $region3: #{tpu_custom_call.1} parent=1 // pred_check_branch
      %10 = sbr.rel (0) target = $region5
    $region4: #{tpu_custom_call.1} parent=1 // pred_region
      _
    $region5: #{tpu_custom_call.1} parent=1 // pred_fallthru
      _
    // Predicated region
    $region6: #{tpu_custom_call.1} parent=1 // pred_check
      _
    $region7: #{tpu_custom_call.1} parent=1 // pred_check_branch
      %12 = sbr.rel (0) target = $region9
    $region8: #{tpu_custom_call.1} parent=1 // pred_region
      _
    $region9: #{tpu_custom_call.1} parent=1 // pred_fallthru
      _
    // Predicated region
    $region10: #{tpu_custom_call.1} parent=1 // pred_check
      _
    $region11: #{tpu_custom_call.1} parent=1 // pred_check_branch
      %14 = sbr.rel (0) target = $region13
    $region12: #{tpu_custom_call.1} parent=1 // pred_region
      %s16 = ssub.s32 256, 256
      %17 = vsyncadd [#allocation3], %s16
      %s18 = sshll.u32 [#allocation2], 4
      %s19 = int_to_ptr.vmem [resolvable:$true] %s18
      %24 = dma.hbm_to_vmem [thread:$0]  %s2, 256, %s19, [#allocation3], 128, 128, 8
    $region13: #{tpu_custom_call.1} parent=1 // pred_fallthru
      _
    // Predicated region
    $region14: #{tpu_custom_call.1} parent=1 // pred_check
      _
    $region15: #{tpu_custom_call.1} parent=1 // pred_check_branch
      %26 = sbr.rel (0) target = $region17
    $region16: #{tpu_custom_call.1} parent=1 // pred_region
      %27 = dma.done [#allocation3], 256
    $region17: #{tpu_custom_call.1} parent=1 // pred_fallthru
      _
    %v28 = vld [vmem:[#allocation2] sm:$0xff]
    %v29 = vld [vmem:[#allocation2 + $0x8] sm:$0xff]
    %v30 = vld [vmem:[%s0] sm:$0x7]
    %v31 = vld [vmem:[%s1] sm:$0x7]
    %33 = vset.pattern.permute.xlu0 0
    %34 = vperm.xlu0 %33, %v30
    %v35 = vpop.permute.xlu0 %34
    %v39 = vlaneseq
    %v40 = vshrl.u32 %v39, 7
    %v41 = vsub.s32 0, %v40
    %v42 = vrot.slane %v28, %v41
    %v43 = vlaneseq
    %v44 = vshrl.u32 %v43, 7
    %v45 = vsub.s32 4, %v44
    %v46 = vrot.slane %v28, %v45
    %v47 = vlaneseq
    %v48 = vshrl.u32 %v47, 7
    %v49 = vsub.s32 0, %v48
    %v50 = vrot.slane %v29, %v49
    %v51 = vlaneseq
    %v52 = vshrl.u32 %v51, 7
    %v53 = vsub.s32 4, %v52
    %v54 = vrot.slane %v29, %v53
    %v59 = vlaneseq
    %v60 = vshrl.u32 %v59, 7
    %v61 = vsub.s32 0, %v60
    %v62 = vrot.slane %v42, %v61
    %v63 = vlaneseq
    %v64 = vshrl.u32 %v63, 7
    %v65 = vsub.s32 0, %v64
    %v66 = vrot.slane %v46, %v65
    %v67 = vlaneseq
    %v68 = vshrl.u32 %v67, 7
    %v69 = vsub.s32 0, %v68
    %v70 = vrot.slane %v50, %v69
    %v71 = vlaneseq
    %v72 = vshrl.u32 %v71, 7
    %v73 = vsub.s32 0, %v72
    %v74 = vrot.slane %v54, %v73
    %v75 = vmul.f32 %v35, %v62
    %v76 = vmul.f32 %v35, %v66
    %v77 = vmul.f32 %v35, %v70
    %v78 = vmul.f32 %v35, %v74
    %79 = vset.pattern.permute.xlu0 1
    %80 = vperm.xlu0 %79, %v30
    %v81 = vpop.permute.xlu0 %80
    %v83 = vlaneseq
    %v84 = vshrl.u32 %v83, 7
    %v85 = vsub.s32 1, %v84
    %v86 = vrot.slane %v28, %v85
    %v87 = vlaneseq
    %v88 = vshrl.u32 %v87, 7
    %v89 = vsub.s32 5, %v88
    %v90 = vrot.slane %v28, %v89
    %v91 = vlaneseq
    %v92 = vshrl.u32 %v91, 7
    %v93 = vsub.s32 1, %v92
    %v94 = vrot.slane %v29, %v93
    %v95 = vlaneseq
    %v96 = vshrl.u32 %v95, 7
    %v97 = vsub.s32 5, %v96
    %v98 = vrot.slane %v29, %v97
    %v103 = vlaneseq
    %v104 = vshrl.u32 %v103, 7
    %v105 = vsub.s32 1, %v104
    %v106 = vrot.slane %v86, %v105
    %v107 = vlaneseq
    %v108 = vshrl.u32 %v107, 7
    %v109 = vsub.s32 1, %v108
    %v110 = vrot.slane %v90, %v109
    %v111 = vlaneseq
    %v112 = vshrl.u32 %v111, 7
    %v113 = vsub.s32 1, %v112
    %v114 = vrot.slane %v94, %v113
    %v115 = vlaneseq
    %v116 = vshrl.u32 %v115, 7
    %v117 = vsub.s32 1, %v116
    %v118 = vrot.slane %v98, %v117
    %v119 = vmul.f32 %v81, %v106
    %v120 = vmul.f32 %v81, %v110
    %v121 = vmul.f32 %v81, %v114
    %v122 = vmul.f32 %v81, %v118
    %v123 = vadd.f32 %v75, %v119
    %v124 = vadd.f32 %v76, %v120
    %v125 = vadd.f32 %v77, %v121
    %v126 = vadd.f32 %v78, %v122
    %127 = vset.pattern.permute.xlu0 2
    %128 = vperm.xlu0 %127, %v30
    %v129 = vpop.permute.xlu0 %128
    %v131 = vlaneseq
    %v132 = vshrl.u32 %v131, 7
    %v133 = vsub.s32 2, %v132
    %v134 = vrot.slane %v28, %v133
    %v135 = vlaneseq
    %v136 = vshrl.u32 %v135, 7
    %v137 = vsub.s32 6, %v136
    %v138 = vrot.slane %v28, %v137
    %v139 = vlaneseq
    %v140 = vshrl.u32 %v139, 7
    %v141 = vsub.s32 2, %v140
    %v142 = vrot.slane %v29, %v141
    %v143 = vlaneseq
    %v144 = vshrl.u32 %v143, 7
    %v145 = vsub.s32 6, %v144
    %v146 = vrot.slane %v29, %v145
    %v151 = vlaneseq
    %v152 = vshrl.u32 %v151, 7
    %v153 = vsub.s32 2, %v152
    %v154 = vrot.slane %v134, %v153
    %v155 = vlaneseq
    %v156 = vshrl.u32 %v155, 7
    %v157 = vsub.s32 2, %v156
    %v158 = vrot.slane %v138, %v157
    %v159 = vlaneseq
    %v160 = vshrl.u32 %v159, 7
    %v161 = vsub.s32 2, %v160
    %v162 = vrot.slane %v142, %v161
    %v163 = vlaneseq
    %v164 = vshrl.u32 %v163, 7
    %v165 = vsub.s32 2, %v164
    %v166 = vrot.slane %v146, %v165
    %v167 = vmul.f32 %v129, %v154
    %v168 = vmul.f32 %v129, %v158
    %v169 = vmul.f32 %v129, %v162
    %v170 = vmul.f32 %v129, %v166
    %v171 = vadd.f32 %v123, %v167
    %v172 = vadd.f32 %v124, %v168
    %v173 = vadd.f32 %v125, %v169
    %v174 = vadd.f32 %v126, %v170
    %175 = vset.pattern.permute.xlu0 3
    %176 = vperm.xlu0 %175, %v30
    %v177 = vpop.permute.xlu0 %176
    %v179 = vlaneseq
    %v180 = vshrl.u32 %v179, 7
    %v181 = vsub.s32 3, %v180
    %v182 = vrot.slane %v28, %v181
    %v183 = vlaneseq
    %v184 = vshrl.u32 %v183, 7
    %v185 = vsub.s32 7, %v184
    %v186 = vrot.slane %v28, %v185
    %v187 = vlaneseq
    %v188 = vshrl.u32 %v187, 7
    %v189 = vsub.s32 3, %v188
    %v190 = vrot.slane %v29, %v189
    %v191 = vlaneseq
    %v192 = vshrl.u32 %v191, 7
    %v193 = vsub.s32 7, %v192
    %v194 = vrot.slane %v29, %v193
    %v199 = vlaneseq
    %v200 = vshrl.u32 %v199, 7
    %v201 = vsub.s32 3, %v200
    %v202 = vrot.slane %v182, %v201
    %v203 = vlaneseq
    %v204 = vshrl.u32 %v203, 7
    %v205 = vsub.s32 3, %v204
    %v206 = vrot.slane %v186, %v205
    %v207 = vlaneseq
    %v208 = vshrl.u32 %v207, 7
    %v209 = vsub.s32 3, %v208
    %v210 = vrot.slane %v190, %v209
    %v211 = vlaneseq
    %v212 = vshrl.u32 %v211, 7
    %v213 = vsub.s32 3, %v212
    %v214 = vrot.slane %v194, %v213
    %v215 = vmul.f32 %v177, %v202
    %v216 = vmul.f32 %v177, %v206
    %v217 = vmul.f32 %v177, %v210
    %v218 = vmul.f32 %v177, %v214
    %v219 = vadd.f32 %v171, %v215
    %v220 = vadd.f32 %v172, %v216
    %v221 = vadd.f32 %v173, %v217
    %v222 = vadd.f32 %v174, %v218
    %224 = vset.pattern.permute.xlu0 0
    %225 = vperm.xlu0 %224, %v31
    %v226 = vpop.permute.xlu0 %225
    %v228 = vadd.f32 %v219, %v226
    %v229 = vadd.f32 %v220, %v226
    %v230 = vadd.f32 %v221, %v226
    %v231 = vadd.f32 %v222, %v226
    %v236 = vcombine.low %v228, %v229
    %v237 = vcombine.low %v230, %v231
    %240 = vst [vmem:[%s3] sm:$0x77] %v236
    %241 = vst [vmem:[%s3 + $0x8] sm:$0x77] %v237
    // Predicated region
    $region18: #{tpu_custom_call.1} parent=1 // pred_check
      _
    $region19: #{tpu_custom_call.1} parent=1 // pred_check_branch
      %243 = sbr.rel (0) target = $region21
    $region20: #{tpu_custom_call.1} parent=1 // pred_region
      _
    $region21: #{tpu_custom_call.1} parent=1 // pred_fallthru
      _
    // Predicated region
    $region22: #{tpu_custom_call.1} parent=1 // pred_check
      _
    $region23: #{tpu_custom_call.1} parent=1 // pred_check_branch
      %245 = sbr.rel (0) target = $region25
    $region24: #{tpu_custom_call.1} parent=1 // pred_region
      _
    $region25: #{tpu_custom_call.1} parent=1 // pred_fallthru
      _
    %246 = vsyncpa [#allocation3], 1

</llo_original>
